<compile_context>
chip_gen: v5e
topology: v5e:2x2
jax: 0.10.0
libtpu: 0.0.40
codegen_flags: <defaults>
</compile_context>

<pallas_src>
import functools

import jax
import jax.numpy as jnp
import numpy as np
from jax.experimental import pallas as pl
from jax.experimental.pallas import tpu as pltpu

SELU_ALPHA = 1.6732632423543772
SELU_SCALE = 1.0507009873554805


def _round_up(x, m):
    return ((x + m - 1) // m) * m


def fc_block_kernel(*refs, p, training):
    """Grid (i, j, k) over (batch tiles, hidden tiles, K tiles).

    refs (training, p>0): x[tm,tk], w[tk,tn], b[1,tn], bits[tm,tn], o[tm,tn], acc[tm,tn]
    refs (eval)         : x[tm,tk], w[tk,tn], b[1,tn],              o[tm,tn], acc[tm,tn]
    """
    use_dropout = training and p > 0.0
    if use_dropout:
        x_ref, w_ref, b_ref, bits_ref, o_ref, acc_ref = refs
    else:
        x_ref, w_ref, b_ref, o_ref, acc_ref = refs
        bits_ref = None

    k = pl.program_id(2)

    @pl.when(k == 0)
    def _init():
        acc_ref[...] = jnp.zeros_like(acc_ref)

    # MXU matmul in the operands' native dtype, f32 accumulation.
    acc_ref[...] += jnp.dot(x_ref[...], w_ref[...],
                            preferred_element_type=jnp.float32)

    @pl.when(k == pl.num_programs(2) - 1)
    def _epilogue():
        y = acc_ref[...] + b_ref[...].astype(jnp.float32)
        # SELU: scale * (x if x > 0 else alpha * (exp(x) - 1))
        y = SELU_SCALE * jnp.where(y > 0.0, y, SELU_ALPHA * (jnp.exp(y) - 1.0))
        if use_dropout:
            # Integer-threshold compare: P(drop) = p, inverted scaling 1/(1-p).
            thresh = jnp.uint32(min(int(round(p * 4294967296.0)), 4294967295))
            keep = bits_ref[...] >= thresh
            y = jnp.where(keep, y * (1.0 / (1.0 - p)), 0.0)
        o_ref[...] = y.astype(o_ref.dtype)


def fc_block(x, weight, bias, *, dropout_p, training=False, rng_key=None,
             tm=256, tn=256, tk=512):
    """x: [batch, input_dim]; weight: [hidden_dim, input_dim] (PyTorch layout);
    bias: [hidden_dim].  Returns [batch, hidden_dim]."""
    M, K = x.shape
    N = weight.shape[0]

    # One-time relayout to the canonical [K, N] MXU RHS layout.
    w_kn = weight.T

    # Clamp tile sizes to the (padded) problem dims; keep lanes 128-aligned.
    tm = min(tm, _round_up(M, 8))
    tn = min(tn, _round_up(N, 128))
    tk = min(tk, _round_up(K, 128))

    Mp, Kp, Np = _round_up(M, tm), _round_up(K, tk), _round_up(N, tn)
    x_p = jnp.pad(x, ((0, Mp - M), (0, Kp - K)))
    w_p = jnp.pad(w_kn, ((0, Kp - K), (0, Np - N)))
    b_p = jnp.pad(bias, (0, Np - N)).reshape(1, Np)

    grid = (Mp // tm, Np // tn, Kp // tk)

    in_specs = [
        pl.BlockSpec((tm, tk), lambda i, j, k: (i, k)),   # x tile
        pl.BlockSpec((tk, tn), lambda i, j, k: (k, j)),   # W tile (K, N)
        pl.BlockSpec((1, tn), lambda i, j, k: (0, j)),    # bias tile
    ]
    args = [x_p, w_p, b_p]

    use_dropout = training and dropout_p > 0.0
    if use_dropout:
        if rng_key is None:
            rng_key = jax.random.PRNGKey(0)
        # Per-element random bits generated once outside the kernel: every
        # output tile sees independent randomness (no per-tile reseed needed).
        bits = jax.random.bits(rng_key, (Mp, Np), dtype=jnp.uint32)
        in_specs.append(pl.BlockSpec((tm, tn), lambda i, j, k: (i, j)))
        args.append(bits)

    kernel = functools.partial(fc_block_kernel, p=float(dropout_p),
                               training=bool(training))
    out = pl.pallas_call(
        kernel,
        out_shape=jax.ShapeDtypeStruct((Mp, Np), x.dtype),
        grid=grid,
        in_specs=in_specs,
        out_specs=pl.BlockSpec((tm, tn), lambda i, j, k: (i, j)),
        scratch_shapes=[pltpu.VMEM((tm, tn), jnp.float32)],
        compiler_params=pltpu.CompilerParams(
            dimension_semantics=("parallel", "parallel", "arbitrary")),
    )(*args)
    return out[:M, :N]


def fc_block_ref(x, weight, bias):
    """Pure-JAX reference (eval mode: dropout is identity)."""
    y = x @ weight.T + bias
    return SELU_SCALE * jnp.where(y > 0.0, y, SELU_ALPHA * (jnp.exp(y) - 1.0))


if __name__ == "__main__":
    dropout_p = 0.1
    key = jax.random.PRNGKey(0)
    kx, kw, kb, kx2, kw2, kb2, kdrop = jax.random.split(key, 7)

    # ---- Test 1: module-like small shapes (single-tile grid after padding) ----
    batch, input_dim, hidden_dim = 8, 32, 32
    bound = 1.0 / np.sqrt(input_dim)
    x = jax.random.normal(kx, (batch, input_dim), dtype=jnp.float32)
    weight = jax.random.uniform(kw, (hidden_dim, input_dim),
                                minval=-bound, maxval=bound, dtype=jnp.float32)
    bias = jax.random.uniform(kb, (hidden_dim,),
                              minval=-bound, maxval=bound, dtype=jnp.float32)

    out_eval = jax.block_until_ready(
        fc_block(x, weight, bias, dropout_p=dropout_p, training=False))
    ref = fc_block_ref(x, weight, bias)
    np.testing.assert_allclose(np.asarray(out_eval), np.asarray(ref),
                               rtol=1e-5, atol=1e-5)

    # Training mode: kept entries must equal ref / (1 - p), dropped entries 0.
    out_train = jax.block_until_ready(
        fc_block(x, weight, bias, dropout_p=dropout_p, training=True,
                 rng_key=kdrop))
    out_train_np = np.asarray(out_train)
    ref_np = np.asarray(ref)
    kept = np.abs(out_train_np) > 0
    np.testing.assert_allclose(out_train_np[kept],
                               (ref_np / (1.0 - dropout_p))[kept],
                               rtol=1e-5, atol=1e-5)
    assert out_train.shape == (batch, hidden_dim)

    # ---- Test 2: shapes + small tiles that exercise a real (2,2,2) grid,
    #      K-accumulation across steps, and N padding (160 -> 256) ----
    batch2, input_dim2, hidden_dim2 = 16, 256, 160
    bound2 = 1.0 / np.sqrt(input_dim2)
    x2 = jax.random.normal(kx2, (batch2, input_dim2), dtype=jnp.float32)
    w2 = jax.random.uniform(kw2, (hidden_dim2, input_dim2),
                            minval=-bound2, maxval=bound2, dtype=jnp.float32)
    b2 = jax.random.uniform(kb2, (hidden_dim2,),
                            minval=-bound2, maxval=bound2, dtype=jnp.float32)
    out2 = jax.block_until_ready(
        fc_block(x2, w2, b2, dropout_p=dropout_p, training=False,
                 tm=8, tn=128, tk=128))
    ref2 = fc_block_ref(x2, w2, b2)
    np.testing.assert_allclose(np.asarray(out2), np.asarray(ref2),
                               rtol=1e-5, atol=1e-5)

    print("KERNEL_OK")
</pallas_src>

<mosaic_0001>
module attributes {stable_mosaic.version = 11 : i64} {
  func.func @fc_block_kernel(%arg0: i32, %arg1: i32, %arg2: i32, %arg3: memref<8x128xf32, #tpu.memory_space<vmem>>, %arg4: memref<128x128xf32, #tpu.memory_space<vmem>>, %arg5: memref<1x128xf32, #tpu.memory_space<vmem>>, %arg6: memref<8x128xf32, #tpu.memory_space<vmem>>, %arg7: memref<8x128xf32, #tpu.memory_space<vmem>>) attributes {dimension_semantics = [#tpu.dimension_semantics<parallel>, #tpu.dimension_semantics<parallel>, #tpu.dimension_semantics<arbitrary>], iteration_bounds = array<i64: 1, 1, 1>, scalar_prefetch = 0 : i64, scratch_operands = 1 : i64, tpu.core_type = #tpu.core_type<tc>, window_params = [{transform_indices = @transform_0, window_bounds = array<i64: 8, 128>}, {transform_indices = @transform_1, window_bounds = array<i64: 128, 128>}, {transform_indices = @transform_2, window_bounds = array<i64: 1, 128>}, {transform_indices = @transform_3, window_bounds = array<i64: 8, 128>}]} {
    %c0_i32 = arith.constant 0 : i32
    %0 = arith.cmpi eq, %arg2, %c0_i32 : i32
    %1 = arith.extui %0 : i1 to i32
    %c0_i32_0 = arith.constant 0 : i32
    %2 = arith.cmpi ne, %1, %c0_i32_0 : i32
    scf.if %2 {
      %cst_10 = arith.constant 0.000000e+00 : f32
      %12 = vector.broadcast %cst_10 : f32 to vector<8x128xf32>
      %c0_11 = arith.constant 0 : index
      %c0_12 = arith.constant 0 : index
      %13 = vector.load %arg7[%c0_11, %c0_12] : memref<8x128xf32, #tpu.memory_space<vmem>>, vector<8x128xf32>
      tpu.vector_store %arg7[%c0_11, %c0_12], %12 {strides = array<i32>} : memref<8x128xf32, #tpu.memory_space<vmem>>, vector<8x128xf32>,
    } else {
    }
    %c0 = arith.constant 0 : index
    %c0_1 = arith.constant 0 : index
    %3 = vector.load %arg7[%c0, %c0_1] : memref<8x128xf32, #tpu.memory_space<vmem>>, vector<8x128xf32>
    %c0_2 = arith.constant 0 : index
    %c0_3 = arith.constant 0 : index
    %4 = vector.load %arg3[%c0_2, %c0_3] : memref<8x128xf32, #tpu.memory_space<vmem>>, vector<8x128xf32>
    %c0_4 = arith.constant 0 : index
    %c0_5 = arith.constant 0 : index
    %5 = vector.load %arg4[%c0_4, %c0_5] : memref<128x128xf32, #tpu.memory_space<vmem>>, vector<128x128xf32>
    %cst = arith.constant dense<0.000000e+00> : vector<8x128xf32>
    %6 = tpu.matmul %4, %5, %cst {dimension_numbers = #tpu.dot_dimension_numbers<[1], [0], [0], [1], [0, 0, 1, 1], [], []>} : vector<8x128xf32>, vector<128x128xf32>, vector<8x128xf32> -> vector<8x128xf32>
    %7 = arith.addf %3, %6 : vector<8x128xf32>
    %c0_6 = arith.constant 0 : index
    %c0_7 = arith.constant 0 : index
    %8 = vector.load %arg7[%c0_6, %c0_7] : memref<8x128xf32, #tpu.memory_space<vmem>>, vector<8x128xf32>
    tpu.vector_store %arg7[%c0_6, %c0_7], %7 {strides = array<i32>} : memref<8x128xf32, #tpu.memory_space<vmem>>, vector<8x128xf32>,
    %c0_i32_8 = arith.constant 0 : i32
    %9 = arith.cmpi eq, %arg2, %c0_i32_8 : i32
    %10 = arith.extui %9 : i1 to i32
    %c0_i32_9 = arith.constant 0 : i32
    %11 = arith.cmpi ne, %10, %c0_i32_9 : i32
    scf.if %11 {
      %c0_10 = arith.constant 0 : index
      %c0_11 = arith.constant 0 : index
      %12 = vector.load %arg7[%c0_10, %c0_11] : memref<8x128xf32, #tpu.memory_space<vmem>>, vector<8x128xf32>
      %c0_12 = arith.constant 0 : index
      %c0_13 = arith.constant 0 : index
      %13 = vector.load %arg5[%c0_12, %c0_13] : memref<1x128xf32, #tpu.memory_space<vmem>>, vector<1x128xf32>
      %14 = vector.broadcast %13 : vector<1x128xf32> to vector<8x128xf32>
      %15 = arith.addf %12, %14 : vector<8x128xf32>
      %cst_14 = arith.constant 0.000000e+00 : f32
      %16 = vector.broadcast %cst_14 : f32 to vector<8x128xf32>
      %17 = arith.cmpf ogt, %15, %16 : vector<8x128xf32>
      %18 = math.exp %15 : vector<8x128xf32>
      %cst_15 = arith.constant 1.000000e+00 : f32
      %19 = vector.broadcast %cst_15 : f32 to vector<8x128xf32>
      %20 = arith.subf %18, %19 : vector<8x128xf32>
      %cst_16 = arith.constant 1.67326319 : f32
      %21 = vector.broadcast %cst_16 : f32 to vector<8x128xf32>
      %22 = arith.mulf %21, %20 : vector<8x128xf32>
      %23 = arith.select %17, %15, %22 : vector<8x128xi1>, vector<8x128xf32>
      %cst_17 = arith.constant 1.05070102 : f32
      %24 = vector.broadcast %cst_17 : f32 to vector<8x128xf32>
      %25 = arith.mulf %24, %23 : vector<8x128xf32>
      %c0_18 = arith.constant 0 : index
      %c0_19 = arith.constant 0 : index
      %26 = vector.load %arg6[%c0_18, %c0_19] : memref<8x128xf32, #tpu.memory_space<vmem>>, vector<8x128xf32>
      tpu.vector_store %arg6[%c0_18, %c0_19], %25 {strides = array<i32>} : memref<8x128xf32, #tpu.memory_space<vmem>>, vector<8x128xf32>,
    } else {
    }
    return
  }
  func.func @transform_0(%arg0: i32, %arg1: i32, %arg2: i32) -> (i32, i32) {
    %c0_i32 = arith.constant 0 : i32
    return %arg0, %arg2 : i32, i32
  }
  func.func @transform_1(%arg0: i32, %arg1: i32, %arg2: i32) -> (i32, i32) {
    %c0_i32 = arith.constant 0 : i32
    return %arg2, %arg1 : i32, i32
  }
  func.func @transform_2(%arg0: i32, %arg1: i32, %arg2: i32) -> (i32, i32) {
    %c0_i32 = arith.constant 0 : i32
    %c0_i32_0 = arith.constant 0 : i32
    return %c0_i32, %arg1 : i32, i32
  }
  func.func @transform_3(%arg0: i32, %arg1: i32, %arg2: i32) -> (i32, i32) {
    %c0_i32 = arith.constant 0 : i32
    return %arg0, %arg1 : i32, i32
  }
}

</mosaic_0001>

<llo_original>
// kernel: tpu_custom_call.1
$region0: #{tpu_custom_call.1}
  #allocation0 [shape = 'u32[]', space=smem, size = 0x4, offset = 0x4, fixed_abs, tag = 'smem constant byte address 0x4 - core index']
  #allocation1 [shape = 'u32[72,128]{1,0:T(1,128)}', space=vmem, size = 0x9000, scoped, tag = 'internal scratch']
  #allocation2 [shape = 'f32[8,128]{1,0:T(8,128)}', space=vmem, size = 0x1000, scoped, tag = 'scratch operand']
  %s0 = inlined_call_operand.hbm [shape: f32[8,128], index: 0, kind: input, shape index: {}]
  %s1 = inlined_call_operand.hbm [shape: f32[128,128], index: 1, kind: input, shape index: {}]
  %s2 = inlined_call_operand.vmem [shape: f32[1,128], index: 2, kind: input, shape index: {}]
  %s3 = inlined_call_operand.hbm [shape: f32[8,128], index: 3, kind: output, shape index: {}]
  %s4 = sld [smem:[#allocation0]]
  $region38: #{tpu_custom_call.1} parent=0
    _
  %s6 = ssub.s32 1, %s4
  %s7 = scalar_select 0, %s6, %s4
  $region1: #{tpu_custom_call.1} parent=0
    #allocation3 [shape = 'u8[4096]{0}', space=vmem, size = 0x1000, scoped, tag = 'input window, operand 0, single buffered']
    #allocation4 [shape = 's32[1]{0}', space=sflag, size = 0x4, scoped, tag = 'scoped memory for tpu_custom_call.1']
    #allocation5 [shape = 's32[1]{0}', space=sflag, size = 0x4, scoped, tag = 'scoped memory for tpu_custom_call.1']
    #allocation6 [shape = 'u8[65536]{0}', space=vmem, size = 0x10000, scoped, tag = 'input window, operand 1, single buffered']
    #allocation7 [shape = 's32[1]{0}', space=sflag, size = 0x4, scoped, tag = 'scoped memory for tpu_custom_call.1']
    #allocation8 [shape = 'u8[4096]{0}', space=vmem, size = 0x1000, scoped, tag = 'output window, operand 0, single buffered']
    %8 = vsyncpa [#allocation4], 0
    %9 = vsyncpa [#allocation7], 0
    %10 = vsyncpa [#allocation5], 0
    // Predicated region
    $region2: #{tpu_custom_call.1} parent=1 // pred_check
      _
    $region3: #{tpu_custom_call.1} parent=1 // pred_check_branch
      %12 = sbr.rel (0) target = $region5
    $region4: #{tpu_custom_call.1} parent=1 // pred_region
      %14 = vsyncadd [#allocation4], 0
      %s16 = sshll.u32 %s0, 4
      %s17 = int_to_ptr.hbm [resolvable:$true] %s16
      %s18 = sshll.u32 [#allocation3], 4
      %s19 = int_to_ptr.vmem [resolvable:$true] %s18
      %21 = dma.hbm_to_vmem [thread:$0]  %s17, 128, %s19, [#allocation4]
    $region5: #{tpu_custom_call.1} parent=1 // pred_fallthru
      _
    // Predicated region
    $region6: #{tpu_custom_call.1} parent=1 // pred_check
      _
    $region7: #{tpu_custom_call.1} parent=1 // pred_check_branch
      %23 = sbr.rel (0) target = $region9
    $region8: #{tpu_custom_call.1} parent=1 // pred_region
      %25 = vsyncadd [#allocation7], 0
      %s26 = sshll.u32 %s1, 4
      %s27 = int_to_ptr.hbm [resolvable:$true] %s26
      %s28 = sshll.u32 [#allocation6], 4
      %s29 = int_to_ptr.vmem [resolvable:$true] %s28
      %34 = dma.hbm_to_vmem [thread:$0]  %s27, 2048, %s29, [#allocation7], 128, 128, 8
    $region9: #{tpu_custom_call.1} parent=1 // pred_fallthru
      _
    // Predicated region
    $region10: #{tpu_custom_call.1} parent=1 // pred_check
      _
    $region11: #{tpu_custom_call.1} parent=1 // pred_check_branch
      %36 = sbr.rel (0) target = $region13
    $region12: #{tpu_custom_call.1} parent=1 // pred_region
      _
    $region13: #{tpu_custom_call.1} parent=1 // pred_fallthru
      _
    // Predicated region
    $region14: #{tpu_custom_call.1} parent=1 // pred_check
      _
    $region15: #{tpu_custom_call.1} parent=1 // pred_check_branch
      %38 = sbr.rel (0) target = $region17
    $region16: #{tpu_custom_call.1} parent=1 // pred_region
      %40 = dma.done [#allocation4], 128
    $region17: #{tpu_custom_call.1} parent=1 // pred_fallthru
      _
    // Predicated region
    $region18: #{tpu_custom_call.1} parent=1 // pred_check
      _
    $region19: #{tpu_custom_call.1} parent=1 // pred_check_branch
      %42 = sbr.rel (0) target = $region21
    $region20: #{tpu_custom_call.1} parent=1 // pred_region
      %44 = dma.done [#allocation7], 2048
    $region21: #{tpu_custom_call.1} parent=1 // pred_fallthru
      _
    %p45 = scmp.eq.s32.totalorder 0, 0
    // Predicated region
    $region22: #{tpu_custom_call.1} parent=1 // pred_check
      %p46 = pneg %p45
    $region23: #{tpu_custom_call.1} parent=1 // pred_check_branch
      %48 = sbr.rel (%p46) target = $region25
    $region24: #{tpu_custom_call.1} parent=1 // pred_region
      %49 = vst [vmem:[#allocation2] sm:$0xff] 0.0
    $region25: #{tpu_custom_call.1} parent=1 // pred_fallthru
      _
    %v50 = vld [vmem:[#allocation2] sm:$0xff]
    %v51 = vld [vmem:[#allocation3] sm:$0xff]
    %v52 = vld [vmem:[#allocation6] sm:$0xff]
    %v53 = vld [vmem:[#allocation6 + $0x8] sm:$0xff]
    %v54 = vld [vmem:[#allocation6 + $0x10] sm:$0xff]
    %v55 = vld [vmem:[#allocation6 + $0x18] sm:$0xff]
    %v56 = vld [vmem:[#allocation6 + $0x20] sm:$0xff]
    %v57 = vld [vmem:[#allocation6 + $0x28] sm:$0xff]
    %v58 = vld [vmem:[#allocation6 + $0x30] sm:$0xff]
    %v59 = vld [vmem:[#allocation6 + $0x38] sm:$0xff]
    %v60 = vld [vmem:[#allocation6 + $0x40] sm:$0xff]
    %v61 = vld [vmem:[#allocation6 + $0x48] sm:$0xff]
    %v62 = vld [vmem:[#allocation6 + $0x50] sm:$0xff]
    %v63 = vld [vmem:[#allocation6 + $0x58] sm:$0xff]
    %v64 = vld [vmem:[#allocation6 + $0x60] sm:$0xff]
    %v65 = vld [vmem:[#allocation6 + $0x68] sm:$0xff]
    %v66 = vld [vmem:[#allocation6 + $0x70] sm:$0xff]
    %v67 = vld [vmem:[#allocation6 + $0x78] sm:$0xff]
    %68 = vmatpush.msra.mxu0 %v67
    %69 = vmatpush.msra.mxu0 %v66
    %70 = vmatpush.msra.mxu0 %v65
    %71 = vmatpush.msra.mxu0 %v64
    %72 = vmatpush.msra.mxu0 %v63
    %73 = vmatpush.msra.mxu0 %v62
    %74 = vmatpush.msra.mxu0 %v61
    %75 = vmatpush.msra.mxu0 %v60
    %76 = vmatpush.msra.mxu0 %v59
    %77 = vmatpush.msra.mxu0 %v58
    %78 = vmatpush.msra.mxu0 %v57
    %79 = vmatpush.msra.mxu0 %v56
    %80 = vmatpush.msra.mxu0 %v55
    %81 = vmatpush.msra.mxu0 %v54
    %82 = vmatpush.msra.mxu0 %v53
    %83 = vmatpush.msra.mxu0 %v52
    %84 = vmatmul.f32.gmra.mxu0 %v51
    %v85 = vpop.f32.mrf.mxu0
    %v86 = vadd.f32 0.0, %v85
    %87 = vdwg.mxu0
    %v88 = vadd.f32 %v50, %v86
    %89 = vst [vmem:[#allocation2] sm:$0xff] %v88
    // Predicated region
    $region26: #{tpu_custom_call.1} parent=1 // pred_check
      %p90 = pneg %p45
    $region27: #{tpu_custom_call.1} parent=1 // pred_check_branch
      %92 = sbr.rel (%p90) target = $region29
    $region28: #{tpu_custom_call.1} parent=1 // pred_region
      %v93 = vld [vmem:[#allocation2] sm:$0xff]
      %v94 = vld [vmem:[%s2] sm:$0x1]
      %v96 = vperm.slane %v94, 0
      %v98 = vadd.f32 %v93, %v96
      %vm99 = vcmp.gt.f32.partialorder %v98, 0.0
      %v100 = vmul.f32 %v98, 1.442695
      %v101 = vpow.pop %v100
      %v102 = vsub.f32 %v101, 1.0
      %v103 = vmul.f32 %v102, 1.6732632
      %v104 = vsel %vm99, %v98, %v103
      %v105 = vmul.f32 %v104, 1.050701
      %106 = vst [vmem:[#allocation8] sm:$0xff] %v105
    $region29: #{tpu_custom_call.1} parent=1 // pred_fallthru
      _
    // Predicated region
    $region30: #{tpu_custom_call.1} parent=1 // pred_check
      _
    $region31: #{tpu_custom_call.1} parent=1 // pred_check_branch
      %108 = sbr.rel (0) target = $region33
    $region32: #{tpu_custom_call.1} parent=1 // pred_region
      %110 = vsyncadd [#allocation5], 0
      %s112 = sshll.u32 [#allocation8], 4
      %s113 = int_to_ptr.vmem [resolvable:$true] %s112
      %s114 = sshll.u32 %s3, 4
      %s115 = int_to_ptr.hbm [resolvable:$true] %s114
      %117 = dma.vmem_to_hbm [thread:$0]  %s113, 128, %s115, [#allocation5]
    $region33: #{tpu_custom_call.1} parent=1 // pred_fallthru
      _
    // Predicated region
    $region34: #{tpu_custom_call.1} parent=1 // pred_check
      _
    $region35: #{tpu_custom_call.1} parent=1 // pred_check_branch
      %119 = sbr.rel (0) target = $region37
    $region36: #{tpu_custom_call.1} parent=1 // pred_region
      %121 = dma.done [#allocation5], 128
    $region37: #{tpu_custom_call.1} parent=1 // pred_fallthru
      _
    %122 = vsyncpa [#allocation4], 1
    %123 = vsyncpa [#allocation7], 1
    %124 = vsyncpa [#allocation5], 1

</llo_original>
